<compile_context>
chip_gen: v7x
topology: tpu7x:2x2x1
jax: 0.10.0
libtpu: 0.0.40
codegen_flags: <defaults>
</compile_context>

<pallas_src>
import functools

import jax
import jax.numpy as jnp
from jax import lax
from jax.experimental import pallas as pl
from jax.experimental.pallas import tpu as pltpu

LN_EPS = 1e-5                    # torch.nn.LayerNorm default
MASK_NEG = -1e30                 # finite "masked" score (avoids -inf -> NaN hazard)


# ----------------------------------------------------------------------------- helpers
def _round_up(x, m):
    return ((x + m - 1) // m) * m


def _row_tile(m, tm):
    """Effective row tile (multiple of 8, <= requested tm) and padded row count."""
    tm_eff = max(8, min(tm, _round_up(m, 8)))
    return tm_eff, _round_up(m, tm_eff)


def _pad_rows(a, m_pad):
    m = a.shape[0]
    if m == m_pad:
        return a
    return jnp.pad(a, ((0, m_pad - m),) + ((0, 0),) * (a.ndim - 1))


def _k_tile(d_inner, tk_max=512):
    """d_inner reduction tile: multiple of 128 dividing d_inner, else d_inner."""
    if d_inner <= tk_max:
        return d_inner
    for cand in range(tk_max, 127, -128):
        if d_inner % cand == 0:
            return cand
    return d_inner


@functools.lru_cache(maxsize=None)
def _vmem_limit_bytes():
    """Generation-aware VMEM budget (v5e/v6e: 128 MiB phys, v7x: 64 MiB phys)."""
    try:
        kind = jax.devices()[0].device_kind.lower()
    except Exception:
        kind = ""
    if "v7" in kind:
        return 48 * 1024 * 1024
    if "v6" in kind or "v5e" in kind or "v5 lite" in kind or "v5lite" in kind:
        return 100 * 1024 * 1024
    return 64 * 1024 * 1024


def _compiler_params(dim_sems):
    return pltpu.CompilerParams(
        dimension_semantics=dim_sems,
        vmem_limit_bytes=_vmem_limit_bytes(),
    )


# ----------------------------------------------------------------------------- kernels
def _linear_bias_kernel(x_ref, w_ref, b_ref, o_ref):
    # matmul in input dtype, f32 accumulation
    y = jnp.dot(x_ref[...], w_ref[...], preferred_element_type=jnp.float32)
    y = y + b_ref[...].astype(jnp.float32)
    o_ref[...] = y.astype(o_ref.dtype)


def _sdpa_heads_kernel(q_ref, k_ref, v_ref, m_ref, o_ref, a_ref, *, n_head, d_k, d_v):
    # One batch element per grid step; all heads processed here so the HBM blocks are
    # lane-dense (Lq, H*d_k) / (Lq, H*d_v) slabs.  1/temperature is already folded
    # into the Q projection.
    m = m_ref[0].astype(jnp.float32)                       # (Lq, Lk) additive mask
    for h in range(n_head):                                # static unroll over heads
        qh = q_ref[0, :, h * d_k:(h + 1) * d_k]            # (Lq, d_k)
        kh = k_ref[0, :, h * d_k:(h + 1) * d_k]            # (Lk, d_k)
        vh = v_ref[0, :, h * d_v:(h + 1) * d_v]            # (Lk, d_v)
        s = lax.dot_general(qh, kh, (((1,), (1,)), ((), ())),
                            preferred_element_type=jnp.float32) + m
        s_max = jnp.max(s, axis=-1, keepdims=True)
        p = jnp.exp(s - s_max)
        attn = p / jnp.sum(p, axis=-1, keepdims=True)
        # TODO(synk): attention dropout omitted (module in eval mode -> identity)
        a_ref[h, 0] = attn.astype(a_ref.dtype)
        oh = jnp.dot(attn.astype(vh.dtype), vh, preferred_element_type=jnp.float32)
        o_ref[0, :, h * d_v:(h + 1) * d_v] = oh.astype(o_ref.dtype)


def _proj_residual_ln_kernel(x_ref, res_ref, pad_ref, w_ref, b_ref, g_ref, be_ref,
                             o_ref):
    y = jnp.dot(x_ref[...], w_ref[...], preferred_element_type=jnp.float32)
    y = y + b_ref[...].astype(jnp.float32)
    y = y + res_ref[...].astype(jnp.float32)                 # residual
    mean = jnp.mean(y, axis=-1, keepdims=True)
    c = y - mean
    var = jnp.mean(c * c, axis=-1, keepdims=True)
    out = c * lax.rsqrt(var + LN_EPS)
    out = out * g_ref[...].astype(jnp.float32) + be_ref[...].astype(jnp.float32)
    out = out * pad_ref[...].astype(jnp.float32)             # non-pad mask (fused)
    o_ref[...] = out.astype(o_ref.dtype)


def _ffn_residual_ln_kernel(x_ref, pad_ref, w1_ref, b1_ref, w2_ref, b2_ref,
                            g_ref, be_ref, o_ref, acc_ref):
    # grid = (row tiles [parallel], d_inner tiles [arbitrary reduction])
    k = pl.program_id(1)

    @pl.when(k == 0)
    def _():
        acc_ref[...] = jnp.zeros_like(acc_ref)

    x = x_ref[...]
    h = jnp.dot(x, w1_ref[...], preferred_element_type=jnp.float32)
    h = jnp.maximum(h + b1_ref[...].astype(jnp.float32), 0.0)
    acc_ref[...] += jnp.dot(h.astype(w2_ref.dtype), w2_ref[...],
                            preferred_element_type=jnp.float32)

    @pl.when(k == pl.num_programs(1) - 1)
    def _():
        y = acc_ref[...] + b2_ref[...].astype(jnp.float32) + x.astype(jnp.float32)
        mean = jnp.mean(y, axis=-1, keepdims=True)
        c = y - mean
        var = jnp.mean(c * c, axis=-1, keepdims=True)
        out = c * lax.rsqrt(var + LN_EPS)
        out = out * g_ref[...].astype(jnp.float32) + be_ref[...].astype(jnp.float32)
        out = out * pad_ref[...].astype(jnp.float32)          # non-pad mask (fused)
        o_ref[...] = out.astype(o_ref.dtype)


# ----------------------------------------------------------------------------- wrappers
def linear(x2d, w, b, *, tm=512):
    m, d_in = x2d.shape
    d_out = w.shape[1]
    tm_eff, m_pad = _row_tile(m, tm)
    xp = _pad_rows(x2d, m_pad)
    out = pl.pallas_call(
        _linear_bias_kernel,
        out_shape=jax.ShapeDtypeStruct((m_pad, d_out), x2d.dtype),
        grid_spec=pltpu.PrefetchScalarGridSpec(
            num_scalar_prefetch=0,
            grid=(m_pad // tm_eff,),
            in_specs=[
                pl.BlockSpec((tm_eff, d_in), lambda i: (i, 0)),
                pl.BlockSpec((d_in, d_out), lambda i: (0, 0)),
                pl.BlockSpec((1, d_out), lambda i: (0, 0)),
            ],
            out_specs=pl.BlockSpec((tm_eff, d_out), lambda i: (i, 0)),
        ),
        compiler_params=_compiler_params(("parallel",)),
    )(xp, w, b.reshape(1, d_out))
    return out[:m]


def sdpa_heads(q_arr, k_arr, v_arr, add_mask, *, n_head, d_k, d_v,
               q_blk=0, k_blk=0, v_blk=0, attn_dtype=jnp.float32):
    """All-heads SDPA.  q_arr/k_arr/v_arr may be the same fused-projection array;
    (q/k/v)_blk select the feature block (units of H*d_k / H*d_v) inside it."""
    b, lq, _ = q_arr.shape
    _, lk, _ = k_arr.shape
    wq = n_head * d_k
    wv = n_head * d_v
    q_map = lambda i: (i, 0, q_blk)
    k_map = lambda i: (i, 0, k_blk)
    v_map = lambda i: (i, 0, v_blk)
    kernel = functools.partial(_sdpa_heads_kernel, n_head=n_head, d_k=d_k, d_v=d_v)
    out, attn = pl.pallas_call(
        kernel,
        out_shape=(jax.ShapeDtypeStruct((b, lq, wv), q_arr.dtype),
                   jax.ShapeDtypeStruct((n_head, b, lq, lk), attn_dtype)),
        grid_spec=pltpu.PrefetchScalarGridSpec(
            num_scalar_prefetch=0,
            grid=(b,),
            in_specs=[
                pl.BlockSpec((1, lq, wq), q_map),
                pl.BlockSpec((1, lk, wq), k_map),
                pl.BlockSpec((1, lk, wv), v_map),
                pl.BlockSpec((1, lq, lk), lambda i: (i, 0, 0)),
            ],
            out_specs=(
                pl.BlockSpec((1, lq, wv), lambda i: (i, 0, 0)),
                pl.BlockSpec((n_head, 1, lq, lk), lambda i: (0, i, 0, 0)),
            ),
        ),
        compiler_params=_compiler_params(("parallel",)),
    )(q_arr, k_arr, v_arr, add_mask)
    # (H, B, Lq, Lk) -> (H*B, Lq, Lk) : contiguous reshape, matches torch ordering.
    return out, attn.reshape(n_head * b, lq, lk)


def proj_residual_ln(x2d, res2d, pad2d, w, b, gamma, beta, *, tm=512):
    m, d_in = x2d.shape
    d_out = w.shape[1]
    tm_eff, m_pad = _row_tile(m, tm)
    xp, rp, pp = _pad_rows(x2d, m_pad), _pad_rows(res2d, m_pad), _pad_rows(pad2d, m_pad)
    out = pl.pallas_call(
        _proj_residual_ln_kernel,
        out_shape=jax.ShapeDtypeStruct((m_pad, d_out), res2d.dtype),
        grid_spec=pltpu.PrefetchScalarGridSpec(
            num_scalar_prefetch=0,
            grid=(m_pad // tm_eff,),
            in_specs=[
                pl.BlockSpec((tm_eff, d_in), lambda i: (i, 0)),
                pl.BlockSpec((tm_eff, d_out), lambda i: (i, 0)),
                pl.BlockSpec((tm_eff, 1), lambda i: (i, 0)),
                pl.BlockSpec((d_in, d_out), lambda i: (0, 0)),
                pl.BlockSpec((1, d_out), lambda i: (0, 0)),
                pl.BlockSpec((1, d_out), lambda i: (0, 0)),
                pl.BlockSpec((1, d_out), lambda i: (0, 0)),
            ],
            out_specs=pl.BlockSpec((tm_eff, d_out), lambda i: (i, 0)),
        ),
        compiler_params=_compiler_params(("parallel",)),
    )(xp, rp, pp, w, b.reshape(1, d_out), gamma.reshape(1, d_out),
      beta.reshape(1, d_out))
    return out[:m]


def ffn_residual_ln(x2d, pad2d, w1, b1, w2, b2, gamma, beta, *, tm=512):
    m, d_model = x2d.shape
    d_inner = w1.shape[1]
    tk = _k_tile(d_inner)
    tm_eff, m_pad = _row_tile(m, tm)
    xp, pp = _pad_rows(x2d, m_pad), _pad_rows(pad2d, m_pad)
    out = pl.pallas_call(
        _ffn_residual_ln_kernel,
        out_shape=jax.ShapeDtypeStruct((m_pad, d_model), x2d.dtype),
        grid_spec=pltpu.PrefetchScalarGridSpec(
            num_scalar_prefetch=0,
            grid=(m_pad // tm_eff, d_inner // tk),
            in_specs=[
                pl.BlockSpec((tm_eff, d_model), lambda i, k: (i, 0)),
                pl.BlockSpec((tm_eff, 1), lambda i, k: (i, 0)),
                pl.BlockSpec((d_model, tk), lambda i, k: (0, k)),
                pl.BlockSpec((1, tk), lambda i, k: (0, k)),
                pl.BlockSpec((tk, d_model), lambda i, k: (k, 0)),
                pl.BlockSpec((1, d_model), lambda i, k: (0, 0)),
                pl.BlockSpec((1, d_model), lambda i, k: (0, 0)),
                pl.BlockSpec((1, d_model), lambda i, k: (0, 0)),
            ],
            out_specs=pl.BlockSpec((tm_eff, d_model), lambda i, k: (i, 0)),
            scratch_shapes=[pltpu.VMEM((tm_eff, d_model), jnp.float32)],
        ),
        compiler_params=_compiler_params(("parallel", "arbitrary")),
    )(xp, pp, w1, b1.reshape(1, d_inner), w2, b2.reshape(1, d_model),
      gamma.reshape(1, d_model), beta.reshape(1, d_model))
    return out[:m]


def multi_head_attention(q_in, k_in, v_in, p, attn_mask, non_pad, *, n_head, d_k, d_v,
                         tm=512, attn_dtype=jnp.float32):
    b, lq, d_model = q_in.shape
    _, lk, _ = k_in.shape
    inv_t = 1.0 / (float(d_k) ** 0.5)
    residual2d = q_in.reshape(b * lq, d_model)

    # Additive mask: single (B, Lq, Lk) bf16 tensor, no n_head tiling.
    add_mask = jnp.where(attn_mask > 0.5, MASK_NEG, 0.0).astype(jnp.bfloat16)

    if (k_in is q_in) and (v_in is q_in) and d_k == d_v:
        # Self-attention: fused QKV projection (1/temperature folded into Q columns).
        w = jnp.concatenate([p["w_qs"] * inv_t, p["w_ks"], p["w_vs"]], axis=1)
        bias = jnp.concatenate([p["b_qs"] * inv_t, p["b_ks"], p["b_vs"]])
        qkv = linear(residual2d, w, bias, tm=tm).reshape(b, lq, 3 * n_head * d_k)
        q_arr = k_arr = v_arr = qkv
        q_blk, k_blk, v_blk = 0, 1, 2
    elif (v_in is k_in) and d_k == d_v:
        # Cross-attention: Q alone, fused K/V projection on the encoder side.
        q_arr = linear(residual2d, p["w_qs"] * inv_t, p["b_qs"] * inv_t,
                       tm=tm).reshape(b, lq, n_head * d_k)
        wkv = jnp.concatenate([p["w_ks"], p["w_vs"]], axis=1)
        bkv = jnp.concatenate([p["b_ks"], p["b_vs"]])
        kv = linear(k_in.reshape(b * lk, d_model), wkv, bkv,
                    tm=tm).reshape(b, lk, 2 * n_head * d_k)
        k_arr = v_arr = kv
        q_blk, k_blk, v_blk = 0, 0, 1
    else:
        # Generic fallback (d_k != d_v or fully distinct q/k/v inputs).
        q_arr = linear(residual2d, p["w_qs"] * inv_t, p["b_qs"] * inv_t,
                       tm=tm).reshape(b, lq, n_head * d_k)
        k_arr = linear(k_in.reshape(b * lk, d_model), p["w_ks"], p["b_ks"],
                       tm=tm).reshape(b, lk, n_head * d_k)
        v_arr = linear(v_in.reshape(b * lk, d_model), p["w_vs"], p["b_vs"],
                       tm=tm).reshape(b, lk, n_head * d_v)
        q_blk = k_blk = v_blk = 0

    out_h, attn = sdpa_heads(q_arr, k_arr, v_arr, add_mask, n_head=n_head, d_k=d_k,
                             d_v=d_v, q_blk=q_blk, k_blk=k_blk, v_blk=v_blk,
                             attn_dtype=attn_dtype)

    # out_h is already (B, Lq, H*d_v): no merge transpose needed before fc.
    # TODO(synk): post-fc dropout omitted (module in eval mode -> identity)
    y2d = proj_residual_ln(out_h.reshape(b * lq, n_head * d_v), residual2d,
                           non_pad.reshape(b * lq, 1),
                           p["w_fc"], p["b_fc"], p["ln_g"], p["ln_b"], tm=tm)
    return y2d.reshape(b, lq, d_model), attn


def positionwise_ffn(x, p, non_pad, *, tm=512):
    b, t, d_model = x.shape
    y2d = ffn_residual_ln(x.reshape(b * t, d_model), non_pad.reshape(b * t, 1),
                          p["w1"], p["b1"], p["w2"], p["b2"],
                          p["ln_g"], p["ln_b"], tm=tm)
    return y2d.reshape(b, t, d_model)


def decoder_layer(dec_input, enc_output, params, non_pad_mask=None,
                  slf_attn_mask=None, dec_enc_attn_mask=None, *,
                  n_head, d_k, d_v, tm=512, attn_dtype=jnp.float32):
    b, lq, _ = dec_input.shape
    _, lk, _ = enc_output.shape
    if non_pad_mask is None:
        non_pad_mask = jnp.ones((b, lq, 1), dec_input.dtype)
    if slf_attn_mask is None:
        slf_attn_mask = jnp.zeros((b, lq, lq), jnp.float32)
    if dec_enc_attn_mask is None:
        dec_enc_attn_mask = jnp.zeros((b, lq, lk), jnp.float32)

    dec_output, slf_attn = multi_head_attention(
        dec_input, dec_input, dec_input, params["slf_attn"],
        slf_attn_mask, non_pad_mask, n_head=n_head, d_k=d_k, d_v=d_v, tm=tm,
        attn_dtype=attn_dtype)
    dec_output, enc_attn = multi_head_attention(
        dec_output, enc_output, enc_output, params["enc_attn"],
        dec_enc_attn_mask, non_pad_mask, n_head=n_head, d_k=d_k, d_v=d_v, tm=tm,
        attn_dtype=attn_dtype)
    dec_output = positionwise_ffn(dec_output, params["pos_ffn"], non_pad_mask, tm=tm)
    return dec_output, slf_attn, enc_attn


# ----------------------------------------------------------------------------- reference
def _layer_norm_ref(y, g, b):
    mean = jnp.mean(y, axis=-1, keepdims=True)
    var = jnp.mean((y - mean) ** 2, axis=-1, keepdims=True)
    return (y - mean) / jnp.sqrt(var + LN_EPS) * g + b


def mha_ref(q, k, v, p, mask, *, n_head, d_k, d_v):
    b, lq, d_model = q.shape
    _, lk, _ = k.shape
    residual = q
    qh = (q @ p["w_qs"] + p["b_qs"]).reshape(b, lq, n_head, d_k).transpose(
        2, 0, 1, 3).reshape(-1, lq, d_k)
    kh = (k @ p["w_ks"] + p["b_ks"]).reshape(b, lk, n_head, d_k).transpose(
        2, 0, 1, 3).reshape(-1, lk, d_k)
    vh = (v @ p["w_vs"] + p["b_vs"]).reshape(b, lk, n_head, d_v).transpose(
        2, 0, 1, 3).reshape(-1, lk, d_v)
    s = jnp.einsum("nqd,nkd->nqk", qh, kh) / (d_k ** 0.5)
    s = jnp.where(jnp.tile(mask > 0.5, (n_head, 1, 1)), MASK_NEG, s)
    attn = jax.nn.softmax(s, axis=-1)
    out = jnp.einsum("nqk,nkd->nqd", attn, vh)
    out = out.reshape(n_head, b, lq, d_v).transpose(1, 2, 0, 3).reshape(
        b, lq, n_head * d_v)
    out = out @ p["w_fc"] + p["b_fc"]
    return _layer_norm_ref(out + residual, p["ln_g"], p["ln_b"]), attn


def ffn_ref(x, p):
    h = jnp.maximum(x @ p["w1"] + p["b1"], 0.0)
    y = h @ p["w2"] + p["b2"]
    return _layer_norm_ref(y + x, p["ln_g"], p["ln_b"])


def decoder_layer_ref(dec_input, enc_output, params, non_pad, slf_mask, de_mask, *,
                      n_head, d_k, d_v):
    y, a1 = mha_ref(dec_input, dec_input, dec_input, params["slf_attn"], slf_mask,
                    n_head=n_head, d_k=d_k, d_v=d_v)
    y = y * non_pad
    y, a2 = mha_ref(y, enc_output, enc_output, params["enc_attn"], de_mask,
                    n_head=n_head, d_k=d_k, d_v=d_v)
    y = y * non_pad
    y = ffn_ref(y, params["pos_ffn"]) * non_pad
    return y, a1, a2


# ----------------------------------------------------------------------------- demo
if __name__ == "__main__":
    B, Lq, Lk = 2, 8, 16
    d_model, d_inner = 128, 256           # lane-dense feature widths
    n_head, d_k, d_v = 4, 32, 32

    key = jax.random.PRNGKey(0)
    keys = jax.random.split(key, 12)

    def nrm(k, shape, scale=0.1):
        return scale * jax.random.normal(k, shape, dtype=jnp.float32)

    def mha_params(ks):
        # nn.Linear weights stored pre-transposed as (in, out)
        return dict(
            w_qs=nrm(ks[0], (d_model, n_head * d_k)),
            b_qs=nrm(ks[1], (n_head * d_k,)),
            w_ks=nrm(ks[2], (d_model, n_head * d_k)),
            b_ks=nrm(ks[3], (n_head * d_k,)),
            w_vs=nrm(ks[4], (d_model, n_head * d_v)),
            b_vs=nrm(ks[5], (n_head * d_v,)),
            w_fc=nrm(ks[6], (n_head * d_v, d_model)),
            b_fc=nrm(ks[7], (d_model,)),
            ln_g=1.0 + nrm(ks[8], (d_model,)),
            ln_b=nrm(ks[9], (d_model,)),
        )

    params = dict(
        slf_attn=mha_params(jax.random.split(keys[0], 10)),
        enc_attn=mha_params(jax.random.split(keys[1], 10)),
        pos_ffn=dict(
            w1=nrm(keys[2], (d_model, d_inner)),
            b1=nrm(keys[3], (d_inner,)),
            w2=nrm(keys[4], (d_inner, d_model)),
            b2=nrm(keys[5], (d_model,)),
            ln_g=1.0 + nrm(keys[6], (d_model,)),
            ln_b=nrm(keys[7], (d_model,)),
        ),
    )

    dec_input = jax.random.normal(keys[8], (B, Lq, d_model), dtype=jnp.float32)
    enc_output = jax.random.normal(keys[9], (B, Lk, d_model), dtype=jnp.float32)

    # non-pad mask: batch 1's last two decoder positions are padding.
    non_pad = jnp.ones((B, Lq, 1), jnp.float32).at[1, Lq - 2:, :].set(0.0)
    # causal self-attention mask (1.0 = masked).
    slf_mask = jnp.broadcast_to(
        jnp.triu(jnp.ones((Lq, Lq), jnp.float32), k=1), (B, Lq, Lq))
    # dec-enc mask: batch 1's last four encoder positions are padding.
    enc_pad = jnp.zeros((B, Lk), jnp.float32).at[1, Lk - 4:].set(1.0)
    de_mask = jnp.broadcast_to(enc_pad[:, None, :], (B, Lq, Lk))

    out, slf_attn, enc_attn = decoder_layer(
        dec_input, enc_output, params, non_pad, slf_mask, de_mask,
        n_head=n_head, d_k=d_k, d_v=d_v, tm=512)
    out = jax.block_until_ready(out)

    ref_out, ref_a1, ref_a2 = decoder_layer_ref(
        dec_input, enc_output, params, non_pad, slf_mask, de_mask,
        n_head=n_head, d_k=d_k, d_v=d_v)

    assert out.shape == (B, Lq, d_model)
    assert slf_attn.shape == (n_head * B, Lq, Lq)
    assert enc_attn.shape == (n_head * B, Lq, Lk)
    assert jnp.allclose(out, ref_out, atol=5e-4, rtol=5e-4), "dec_output mismatch"
    assert jnp.allclose(slf_attn, ref_a1, atol=5e-4, rtol=5e-4), "slf_attn mismatch"
    assert jnp.allclose(enc_attn, ref_a2, atol=5e-4, rtol=5e-4), "enc_attn mismatch"

    print("KERNEL_OK")
</pallas_src>

<mosaic_0001>
module attributes {stable_mosaic.version = 11 : i64} {
  func.func @_linear_bias_kernel(%arg0: i32, %arg1: memref<16x128xf32, #tpu.memory_space<vmem>>, %arg2: memref<128x384xf32, #tpu.memory_space<vmem>>, %arg3: memref<1x384xf32, #tpu.memory_space<vmem>>, %arg4: memref<16x384xf32, #tpu.memory_space<vmem>>) attributes {dimension_semantics = [#tpu.dimension_semantics<parallel>], iteration_bounds = array<i64: 1>, scalar_prefetch = 0 : i64, scratch_operands = 0 : i64, tpu.core_type = #tpu.core_type<tc>, window_params = [{transform_indices = @transform_0, window_bounds = array<i64: 16, 128>}, {pipeline_mode = #tpu.pipeline_mode<synchronous>, transform_indices = @transform_1, window_bounds = array<i64: 128, 384>}, {pipeline_mode = #tpu.pipeline_mode<synchronous>, transform_indices = @transform_2, window_bounds = array<i64: 1, 384>}, {transform_indices = @transform_3, window_bounds = array<i64: 16, 384>}]} {
    %c0 = arith.constant 0 : index
    %c0_0 = arith.constant 0 : index
    %0 = vector.load %arg1[%c0, %c0_0] : memref<16x128xf32, #tpu.memory_space<vmem>>, vector<16x128xf32>
    %c0_1 = arith.constant 0 : index
    %c0_2 = arith.constant 0 : index
    %1 = vector.load %arg2[%c0_1, %c0_2] : memref<128x384xf32, #tpu.memory_space<vmem>>, vector<128x384xf32>
    %cst = arith.constant dense<0.000000e+00> : vector<16x384xf32>
    %2 = tpu.matmul %0, %1, %cst {dimension_numbers = #tpu.dot_dimension_numbers<[1], [0], [0], [1], [0, 0, 1, 1], [], []>} : vector<16x128xf32>, vector<128x384xf32>, vector<16x384xf32> -> vector<16x384xf32>
    %c0_3 = arith.constant 0 : index
    %c0_4 = arith.constant 0 : index
    %3 = vector.load %arg3[%c0_3, %c0_4] : memref<1x384xf32, #tpu.memory_space<vmem>>, vector<1x384xf32>
    %4 = vector.broadcast %3 : vector<1x384xf32> to vector<16x384xf32>
    %5 = arith.addf %2, %4 : vector<16x384xf32>
    %c0_5 = arith.constant 0 : index
    %c0_6 = arith.constant 0 : index
    %6 = vector.load %arg4[%c0_5, %c0_6] : memref<16x384xf32, #tpu.memory_space<vmem>>, vector<16x384xf32>
    tpu.vector_store %arg4[%c0_5, %c0_6], %5 {strides = array<i32>} : memref<16x384xf32, #tpu.memory_space<vmem>>, vector<16x384xf32>,
    return
  }
  func.func @transform_0(%arg0: i32) -> (i32, i32) {
    %c0_i32 = arith.constant 0 : i32
    %c0_i32_0 = arith.constant 0 : i32
    return %arg0, %c0_i32 : i32, i32
  }
  func.func @transform_1(%arg0: i32) -> (i32, i32) {
    %c0_i32 = arith.constant 0 : i32
    %c0_i32_0 = arith.constant 0 : i32
    %c0_i32_1 = arith.constant 0 : i32
    return %c0_i32, %c0_i32_0 : i32, i32
  }
  func.func @transform_2(%arg0: i32) -> (i32, i32) {
    %c0_i32 = arith.constant 0 : i32
    %c0_i32_0 = arith.constant 0 : i32
    %c0_i32_1 = arith.constant 0 : i32
    return %c0_i32, %c0_i32_0 : i32, i32
  }
  func.func @transform_3(%arg0: i32) -> (i32, i32) {
    %c0_i32 = arith.constant 0 : i32
    %c0_i32_0 = arith.constant 0 : i32
    return %arg0, %c0_i32 : i32, i32
  }
}

</mosaic_0001>

<llo_original>
// kernel: tpu_custom_call.1
$region0: #{tpu_custom_call.1}
  #allocation0 [shape = 'u32[]', space=smem, size = 0x4, offset = 0x4, fixed_abs, tag = 'smem constant byte address 0x4 - core index']
  #allocation1 [shape = 'u32[144,128]{1,0:T(1,128)}', space=vmem, size = 0x12000, scoped, tag = 'internal scratch']
  %s0 = inlined_call_operand.hbm [shape: f32[16,128], index: 0, kind: input, shape index: {}]
  %s1 = inlined_call_operand.hbm [shape: f32[128,384], index: 1, kind: input, shape index: {}]
  %s2 = inlined_call_operand.hbm [shape: f32[1,384], index: 2, kind: input, shape index: {}]
  %s3 = inlined_call_operand.hbm [shape: f32[16,384], index: 3, kind: output, shape index: {}]
  %s4 = sld [smem:[#allocation0]]
  $region34: #{tpu_custom_call.1} parent=0
    _
  %s6 = ssub.s32 1, %s4
  %s7 = scalar_select 0, %s6, %s4
  $region1: #{tpu_custom_call.1} parent=0
    #allocation2 [shape = 'u8[8192]{0}', space=vmem, size = 0x2000, scoped, tag = 'input window, operand 0, single buffered']
    #allocation3 [shape = 's32[1]{0}', space=sflag, size = 0x4, scoped, tag = 'scoped memory for tpu_custom_call.1']
    #allocation4 [shape = 's32[1]{0}', space=sflag, size = 0x4, scoped, tag = 'scoped memory for tpu_custom_call.1']
    #allocation5 [shape = 'u8[196608]{0}', space=vmem, size = 0x30000, scoped, tag = 'input window, operand 1, single buffered']
    #allocation6 [shape = 's32[1]{0}', space=sflag, size = 0x4, scoped, tag = 'scoped memory for tpu_custom_call.1']
    #allocation7 [shape = 'u8[1536]{0}', space=vmem, size = 0x800, scoped, tag = 'input window, operand 2, single buffered']
    #allocation8 [shape = 'u8[24576]{0}', space=vmem, size = 0x6000, scoped, tag = 'output window, operand 0, single buffered']
    %8 = vsyncpa [#allocation3], 0
    %9 = vsyncpa [#allocation6], 0
    %10 = vsyncpa [#allocation4], 0
    // Predicated region
    $region2: #{tpu_custom_call.1} parent=1 // pred_check
      _
    $region3: #{tpu_custom_call.1} parent=1 // pred_check_branch
      %12 = sbr.rel (0) target = $region5
    $region4: #{tpu_custom_call.1} parent=1 // pred_region
      %s14 = ssub.s32 256, 256
      %15 = vsyncadd [#allocation3], %s14
      %s16 = sshll.u32 [#allocation2], 4
      %s17 = int_to_ptr.vmem [resolvable:$true] %s16
      %22 = dma.hbm_to_vmem [thread:$0]  %s0, 256, %s17, [#allocation3], 128, 128, 8
    $region5: #{tpu_custom_call.1} parent=1 // pred_fallthru
      _
    // Predicated region
    $region6: #{tpu_custom_call.1} parent=1 // pred_check
      _
    $region7: #{tpu_custom_call.1} parent=1 // pred_check_branch
      %24 = sbr.rel (0) target = $region9
    $region8: #{tpu_custom_call.1} parent=1 // pred_region
      %s26 = ssub.s32 6144, 6144
      %27 = vsyncadd [#allocation6], %s26
      %s28 = sshll.u32 [#allocation5], 4
      %s29 = int_to_ptr.vmem [resolvable:$true] %s28
      %34 = dma.hbm_to_vmem [thread:$0]  %s1, 6144, %s29, [#allocation6], 384, 384, 24
    $region9: #{tpu_custom_call.1} parent=1 // pred_fallthru
      _
    // Predicated region
    $region10: #{tpu_custom_call.1} parent=1 // pred_check
      _
    $region11: #{tpu_custom_call.1} parent=1 // pred_check_branch
      %36 = sbr.rel (0) target = $region13
    $region12: #{tpu_custom_call.1} parent=1 // pred_region
      %s38 = ssub.s32 48, 48
      %39 = vsyncadd [#allocation6], %s38
      %s41 = sshll.u32 [#allocation7], 4
      %s42 = int_to_ptr.vmem [resolvable:$true] %s41
      %44 = dma.hbm_to_vmem [thread:$0]  %s2, 48, %s42, [#allocation6]
    $region13: #{tpu_custom_call.1} parent=1 // pred_fallthru
      _
    // Predicated region
    $region14: #{tpu_custom_call.1} parent=1 // pred_check
      _
    $region15: #{tpu_custom_call.1} parent=1 // pred_check_branch
      %46 = sbr.rel (0) target = $region17
    $region16: #{tpu_custom_call.1} parent=1 // pred_region
      %47 = dma.done [#allocation3], 256
    $region17: #{tpu_custom_call.1} parent=1 // pred_fallthru
      _
    // Predicated region
    $region18: #{tpu_custom_call.1} parent=1 // pred_check
      _
    $region19: #{tpu_custom_call.1} parent=1 // pred_check_branch
      %49 = sbr.rel (0) target = $region21
    $region20: #{tpu_custom_call.1} parent=1 // pred_region
      %50 = dma.done [#allocation6], 6144
    $region21: #{tpu_custom_call.1} parent=1 // pred_fallthru
      _
    // Predicated region
    $region22: #{tpu_custom_call.1} parent=1 // pred_check
      _
    $region23: #{tpu_custom_call.1} parent=1 // pred_check_branch
      %52 = sbr.rel (0) target = $region25
    $region24: #{tpu_custom_call.1} parent=1 // pred_region
      %53 = dma.done [#allocation6], 48
    $region25: #{tpu_custom_call.1} parent=1 // pred_fallthru
      _
    %v54 = vld [vmem:[#allocation2] sm:$0xff]
    %v55 = vld [vmem:[#allocation2 + $0x8] sm:$0xff]
    %v56 = vld [vmem:[#allocation5] sm:$0xff]
    %v57 = vld [vmem:[#allocation5 + $0x8] sm:$0xff]
    %v58 = vld [vmem:[#allocation5 + $0x10] sm:$0xff]
    %v59 = vld [vmem:[#allocation5 + $0x18] sm:$0xff]
    %v60 = vld [vmem:[#allocation5 + $0x20] sm:$0xff]
    %v61 = vld [vmem:[#allocation5 + $0x28] sm:$0xff]
    %v62 = vld [vmem:[#allocation5 + $0x30] sm:$0xff]
    %v63 = vld [vmem:[#allocation5 + $0x38] sm:$0xff]
    %v64 = vld [vmem:[#allocation5 + $0x40] sm:$0xff]
    %v65 = vld [vmem:[#allocation5 + $0x48] sm:$0xff]
    %v66 = vld [vmem:[#allocation5 + $0x50] sm:$0xff]
    %v67 = vld [vmem:[#allocation5 + $0x58] sm:$0xff]
    %v68 = vld [vmem:[#allocation5 + $0x60] sm:$0xff]
    %v69 = vld [vmem:[#allocation5 + $0x68] sm:$0xff]
    %v70 = vld [vmem:[#allocation5 + $0x70] sm:$0xff]
    %v71 = vld [vmem:[#allocation5 + $0x78] sm:$0xff]
    %v72 = vld [vmem:[#allocation5 + $0x80] sm:$0xff]
    %v73 = vld [vmem:[#allocation5 + $0x88] sm:$0xff]
    %v74 = vld [vmem:[#allocation5 + $0x90] sm:$0xff]
    %v75 = vld [vmem:[#allocation5 + $0x98] sm:$0xff]
    %v76 = vld [vmem:[#allocation5 + $0xa0] sm:$0xff]
    %v77 = vld [vmem:[#allocation5 + $0xa8] sm:$0xff]
    %v78 = vld [vmem:[#allocation5 + $0xb0] sm:$0xff]
    %v79 = vld [vmem:[#allocation5 + $0xb8] sm:$0xff]
    %v80 = vld [vmem:[#allocation5 + $0xc0] sm:$0xff]
    %v81 = vld [vmem:[#allocation5 + $0xc8] sm:$0xff]
    %v82 = vld [vmem:[#allocation5 + $0xd0] sm:$0xff]
    %v83 = vld [vmem:[#allocation5 + $0xd8] sm:$0xff]
    %v84 = vld [vmem:[#allocation5 + $0xe0] sm:$0xff]
    %v85 = vld [vmem:[#allocation5 + $0xe8] sm:$0xff]
    %v86 = vld [vmem:[#allocation5 + $0xf0] sm:$0xff]
    %v87 = vld [vmem:[#allocation5 + $0xf8] sm:$0xff]
    %v88 = vld [vmem:[#allocation5 + $0x100] sm:$0xff]
    %v89 = vld [vmem:[#allocation5 + $0x108] sm:$0xff]
    %v90 = vld [vmem:[#allocation5 + $0x110] sm:$0xff]
    %v91 = vld [vmem:[#allocation5 + $0x118] sm:$0xff]
    %v92 = vld [vmem:[#allocation5 + $0x120] sm:$0xff]
    %v93 = vld [vmem:[#allocation5 + $0x128] sm:$0xff]
    %v94 = vld [vmem:[#allocation5 + $0x130] sm:$0xff]
    %v95 = vld [vmem:[#allocation5 + $0x138] sm:$0xff]
    %v96 = vld [vmem:[#allocation5 + $0x140] sm:$0xff]
    %v97 = vld [vmem:[#allocation5 + $0x148] sm:$0xff]
    %v98 = vld [vmem:[#allocation5 + $0x150] sm:$0xff]
    %v99 = vld [vmem:[#allocation5 + $0x158] sm:$0xff]
    %v100 = vld [vmem:[#allocation5 + $0x160] sm:$0xff]
    %v101 = vld [vmem:[#allocation5 + $0x168] sm:$0xff]
    %v102 = vld [vmem:[#allocation5 + $0x170] sm:$0xff]
    %v103 = vld [vmem:[#allocation5 + $0x178] sm:$0xff]
    %v104 = vld [vmem:[#allocation7] sm:$0x7]
    %v106 = vlaneseq
    %v107 = vshrl.u32 %v106, 7
    %v108 = vsub.s32 0, %v107
    %v109 = vrot.slane %v104, %v108
    %v110 = vlaneseq
    %v111 = vshrl.u32 %v110, 7
    %v112 = vsub.s32 1, %v111
    %v113 = vrot.slane %v104, %v112
    %v114 = vlaneseq
    %v115 = vshrl.u32 %v114, 7
    %v116 = vsub.s32 2, %v115
    %v117 = vrot.slane %v104, %v116
    %121 = vmatprep.subr.mxu0 %v57
    %122 = vmatpush1.msra.mxu0 %v56
    %123 = vmatprep.subr.mxu0 %v60
    %124 = vmatpush1.msra.mxu0 %v59
    %125 = vmatprep.subr.mxu0 %v63
    %126 = vmatpush1.msra.mxu0 %v62
    %127 = vmatprep.subr.mxu0 %v66
    %128 = vmatpush1.msra.mxu0 %v65
    %129 = vmatprep.subr.mxu0 %v69
    %130 = vmatpush1.msra.mxu0 %v68
    %131 = vmatprep.subr.mxu0 %v72
    %132 = vmatpush1.msra.mxu0 %v71
    %133 = vmatprep.subr.mxu0 %v75
    %134 = vmatpush1.msra.mxu0 %v74
    %135 = vmatprep.subr.mxu0 %v78
    %136 = vmatpush1.msra.mxu0 %v77
    %137 = vmatprep.subr.mxu0 %v81
    %138 = vmatpush1.msra.mxu0 %v80
    %139 = vmatprep.subr.mxu0 %v84
    %140 = vmatpush1.msra.mxu0 %v83
    %141 = vmatprep.subr.mxu0 %v87
    %142 = vmatpush1.msra.mxu0 %v86
    %143 = vmatprep.subr.mxu0 %v90
    %144 = vmatpush1.msra.mxu0 %v89
    %145 = vmatprep.subr.mxu0 %v93
    %146 = vmatpush1.msra.mxu0 %v92
    %147 = vmatprep.subr.mxu0 %v96
    %148 = vmatpush1.msra.mxu0 %v95
    %149 = vmatprep.subr.mxu0 %v99
    %150 = vmatpush1.msra.mxu0 %v98
    %151 = vmatprep.subr.mxu0 %v102
    %152 = vmatpush1.msra.mxu0 %v101
    %153 = vmatprep.subr.mxu0 0.0
    %154 = vmatpush1.msra.mxu0 0.0
    %155 = vmatprep.subr.mxu0 0.0
    %156 = vmatpush1.msra.mxu0 0.0
    %157 = vmatprep.subr.mxu0 0.0
    %158 = vmatpush1.msra.mxu0 0.0
    %159 = vmatprep.subr.mxu0 0.0
    %160 = vmatpush1.msra.mxu0 0.0
    %161 = vmatprep.subr.mxu0 0.0
    %162 = vmatpush1.msra.mxu0 0.0
    %163 = vmatprep.subr.mxu0 0.0
    %164 = vmatpush1.msra.mxu0 0.0
    %165 = vmatprep.subr.mxu0 0.0
    %166 = vmatpush1.msra.mxu0 0.0
    %167 = vmatprep.subr.mxu0 0.0
    %168 = vmatpush1.msra.mxu0 0.0
    %169 = vmatprep.subr.mxu0 0.0
    %170 = vmatpush1.msra.mxu0 0.0
    %171 = vmatprep.subr.mxu0 0.0
    %172 = vmatpush1.msra.mxu0 0.0
    %173 = vmatprep.subr.mxu0 0.0
    %174 = vmatpush1.msra.mxu0 0.0
    %175 = vmatprep.subr.mxu0 0.0
    %176 = vmatpush1.msra.mxu0 0.0
    %177 = vmatprep.subr.mxu0 0.0
    %178 = vmatpush1.msra.mxu0 0.0
    %179 = vmatprep.subr.mxu0 0.0
    %180 = vmatpush1.msra.mxu0 0.0
    %181 = vmatprep.subr.mxu0 0.0
    %182 = vmatpush1.msra.mxu0 0.0
    %183 = vmatprep.subr.mxu0 0.0
    %184 = vmatpush1.msra.mxu0 0.0
    %185 = vmatprep.mubr.f32.mxu0 0.0
    %186 = vmatmul.mubr.f32.gmra.mrb[0].mxu0 %v54
    %v187 = vpop.f32.mrb[0].mxu0
    %v188 = vadd.f32 %v109, %v187
    %v189 = vpop.f32.mrb[0].mxu0
    %v190 = vadd.f32 %v113, %v189
    %191 = vmatprep.mubr.f32.mxu0 0.0
    %192 = vmatmul.mubr.f32.gmra.mrb[0].mxu0 %v55
    %v193 = vpop.f32.mrb[0].mxu0
    %v194 = vadd.f32 %v109, %v193
    %v195 = vpop.f32.mrb[0].mxu0
    %v196 = vadd.f32 %v113, %v195
    %197 = vdwg.mxu0
    %198 = vmatprep.subr.mxu0 0.0
    %199 = vmatpush1.msra.mxu0 %v58
    %200 = vmatprep.subr.mxu0 0.0
    %201 = vmatpush1.msra.mxu0 %v61
    %202 = vmatprep.subr.mxu0 0.0
    %203 = vmatpush1.msra.mxu0 %v64
    %204 = vmatprep.subr.mxu0 0.0
    %205 = vmatpush1.msra.mxu0 %v67
    %206 = vmatprep.subr.mxu0 0.0
    %207 = vmatpush1.msra.mxu0 %v70
    %208 = vmatprep.subr.mxu0 0.0
    %209 = vmatpush1.msra.mxu0 %v73
    %210 = vmatprep.subr.mxu0 0.0
    %211 = vmatpush1.msra.mxu0 %v76
    %212 = vmatprep.subr.mxu0 0.0
    %213 = vmatpush1.msra.mxu0 %v79
    %214 = vmatprep.subr.mxu0 0.0
    %215 = vmatpush1.msra.mxu0 %v82
    %216 = vmatprep.subr.mxu0 0.0
    %217 = vmatpush1.msra.mxu0 %v85
    %218 = vmatprep.subr.mxu0 0.0
    %219 = vmatpush1.msra.mxu0 %v88
    %220 = vmatprep.subr.mxu0 0.0
    %221 = vmatpush1.msra.mxu0 %v91
    %222 = vmatprep.subr.mxu0 0.0
    %223 = vmatpush1.msra.mxu0 %v94
    %224 = vmatprep.subr.mxu0 0.0
    %225 = vmatpush1.msra.mxu0 %v97
    %226 = vmatprep.subr.mxu0 0.0
    %227 = vmatpush1.msra.mxu0 %v100
    %228 = vmatprep.subr.mxu0 0.0
    %229 = vmatpush1.msra.mxu0 %v103
    %230 = vmatprep.subr.mxu0 0.0
    %231 = vmatpush1.msra.mxu0 0.0
    %232 = vmatprep.subr.mxu0 0.0
    %233 = vmatpush1.msra.mxu0 0.0
    %234 = vmatprep.subr.mxu0 0.0
    %235 = vmatpush1.msra.mxu0 0.0
    %236 = vmatprep.subr.mxu0 0.0
    %237 = vmatpush1.msra.mxu0 0.0
    %238 = vmatprep.subr.mxu0 0.0
    %239 = vmatpush1.msra.mxu0 0.0
    %240 = vmatprep.subr.mxu0 0.0
    %241 = vmatpush1.msra.mxu0 0.0
    %242 = vmatprep.subr.mxu0 0.0
    %243 = vmatpush1.msra.mxu0 0.0
    %244 = vmatprep.subr.mxu0 0.0
    %245 = vmatpush1.msra.mxu0 0.0
    %246 = vmatprep.subr.mxu0 0.0
    %247 = vmatpush1.msra.mxu0 0.0
    %248 = vmatprep.subr.mxu0 0.0
    %249 = vmatpush1.msra.mxu0 0.0
    %250 = vmatprep.subr.mxu0 0.0
    %251 = vmatpush1.msra.mxu0 0.0
    %252 = vmatprep.subr.mxu0 0.0
    %253 = vmatpush1.msra.mxu0 0.0
    %254 = vmatprep.subr.mxu0 0.0
    %255 = vmatpush1.msra.mxu0 0.0
    %256 = vmatprep.subr.mxu0 0.0
    %257 = vmatpush1.msra.mxu0 0.0
    %258 = vmatprep.subr.mxu0 0.0
    %259 = vmatpush1.msra.mxu0 0.0
    %260 = vmatprep.subr.mxu0 0.0
    %261 = vmatpush1.msra.mxu0 0.0
    %262 = vmatprep.mubr.f32.mxu0 0.0
    %263 = vmatmul.mubr.f32.gmra.mrb[0].mxu0 %v54
    %v264 = vpop.f32.mrb[0].mxu0
    %v265 = vadd.f32 %v117, %v264
    %v266 = vpop.f32.mrb[0].mxu0
    %267 = vmatprep.mubr.f32.mxu0 0.0
    %268 = vmatmul.mubr.f32.gmra.mrb[0].mxu0 %v55
    %v269 = vpop.f32.mrb[0].mxu0
    %v270 = vadd.f32 %v117, %v269
    %v271 = vpop.f32.mrb[0].mxu0
    %272 = vdwg.mxu0
    %273 = vst [vmem:[#allocation8] sm:$0xff] %v188
    %274 = vst [vmem:[#allocation8 + $0x8] sm:$0xff] %v190
    %275 = vst [vmem:[#allocation8 + $0x10] sm:$0xff] %v265
    %276 = vst [vmem:[#allocation8 + $0x18] sm:$0xff] %v194
    %277 = vst [vmem:[#allocation8 + $0x20] sm:$0xff] %v196
    %278 = vst [vmem:[#allocation8 + $0x28] sm:$0xff] %v270
    // Predicated region
    $region26: #{tpu_custom_call.1} parent=1 // pred_check
      _
    $region27: #{tpu_custom_call.1} parent=1 // pred_check_branch
      %280 = sbr.rel (0) target = $region29
    $region28: #{tpu_custom_call.1} parent=1 // pred_region
      %s282 = ssub.s32 768, 768
      %283 = vsyncadd [#allocation4], %s282
      %s284 = sshll.u32 [#allocation8], 4
      %s285 = int_to_ptr.vmem [resolvable:$true] %s284
      %290 = dma.vmem_to_hbm [thread:$0]  %s285, 768, %s3, [#allocation4], 384, 384, 24
    $region29: #{tpu_custom_call.1} parent=1 // pred_fallthru
      _
    // Predicated region
    $region30: #{tpu_custom_call.1} parent=1 // pred_check
      _
    $region31: #{tpu_custom_call.1} parent=1 // pred_check_branch
      %292 = sbr.rel (0) target = $region33
    $region32: #{tpu_custom_call.1} parent=1 // pred_region
      %293 = dma.done [#allocation4], 768
    $region33: #{tpu_custom_call.1} parent=1 // pred_fallthru
      _
    %294 = vsyncpa [#allocation3], 1
    %295 = vsyncpa [#allocation6], 1
    %296 = vsyncpa [#allocation4], 1

</llo_original>
